<compile_context>
chip_gen: v7x
topology: tpu7x:2x2x1
jax: 0.10.0
libtpu: 0.0.40
codegen_flags: <defaults>
</compile_context>

<pallas_src>
import jax
import jax.numpy as jnp
from jax.experimental import pallas as pl
from jax.experimental.pallas import tpu as pltpu


def mix_kernel(id_ref, feat_ref, w1_ref, w1_id_ref, b1_ref, w2_ref, b2_ref, out_ref):
    """out = relu(feat @ W1_fused + b1 + onehot(id) @ W1_id) @ W2_blockdiag + b2."""
    # Layer 1: cast frames to bf16 in-kernel (VPU), bf16 x bf16 on the MXU, f32 accumulate.
    h = jnp.dot(feat_ref[...].astype(jnp.bfloat16), w1_ref[...],
                preferred_element_type=jnp.float32)

    # Per-row id bias computed in-kernel: b1 + one_hot(id) @ W1_id.
    # S is tiny and static (=num_of_seekers), so unrolled selects beat a K=S matmul.
    ids = id_ref[...]                                   # (TILE_B, 1) int32
    w1_id = w1_id_ref[...]                              # (S, 2H) f32
    bias = b1_ref[...]                                  # (1, 2H) f32, broadcasts over rows
    for s in range(w1_id.shape[0]):
        bias = bias + jnp.where(ids == s, 1.0, 0.0) * w1_id[s:s + 1, :]

    h = jnp.maximum(h + bias, 0.0)                      # f32 bias + ReLU on the VPU

    # Layer 2: tiny block-diagonal matmul kept in f32 (first A lanes = base head, last A
    # lanes = addon head == torch.cat(dim=1) with no in-kernel lane shuffle).
    out_ref[...] = (jnp.dot(h, w2_ref[...], preferred_element_type=jnp.float32)
                    + b2_ref[...])


def pack_mix_params(params, flat_dim):
    """One-time packing of per-head f32 params into the fused kernel operands."""
    (w1b, b1b, w2b, b2b, w1a, b1a, w2a, b2a) = params
    H = w1b.shape[1]
    A = w2b.shape[1]
    # Layer 1: [frames-part | id-part] split, heads concatenated along the output axis.
    w1_fused = jnp.concatenate([w1b[:flat_dim], w1a[:flat_dim]], axis=1)   # (D, 2H)
    w1_id = jnp.concatenate([w1b[flat_dim:], w1a[flat_dim:]], axis=1)      # (S, 2H)
    b1_fused = jnp.concatenate([b1b, b1a], axis=1)                         # (1, 2H)
    # Layer 2: block-diagonal so each head only reads its own hidden half (zeros exact).
    w2_fused = (jnp.zeros((2 * H, 2 * A), jnp.float32)
                .at[:H, :A].set(w2b)
                .at[H:, A:].set(w2a))                                      # (2H, 2A)
    b2_fused = jnp.concatenate([b2b, b2a], axis=1)                         # (1, 2A)
    return (w1_fused.astype(jnp.bfloat16), w1_id.astype(jnp.float32), b1_fused,
            w2_fused, b2_fused)


def mix_forward(x, seeker_id, packed, *, tile_b=8):
    """Single pallas_call forward. tile_b: rows per grid step (demo 8; production >= 512,
    a multiple of 256 on v6e/v7x and 128 on v5e)."""
    w1_bf, w1_id, b1, w2, b2 = packed
    B = x.shape[0]

    flat = x.reshape(B, -1)                         # (B, D) f32 — reshape is layout-free
    ids = seeker_id.reshape(B, 1).astype(jnp.int32)

    D = flat.shape[1]
    H2 = w1_bf.shape[1]
    S = w1_id.shape[0]
    out_dim = w2.shape[1]

    num_tiles = pl.cdiv(B, tile_b)
    b_pad = num_tiles * tile_b
    if b_pad != B:                                   # pad rows to a whole number of tiles
        flat = jnp.pad(flat, ((0, b_pad - B), (0, 0)))
        ids = jnp.pad(ids, ((0, b_pad - B), (0, 0)))

    cost = pl.CostEstimate(
        flops=2 * b_pad * D * H2 + 2 * b_pad * H2 * out_dim,
        transcendentals=0,
        bytes_accessed=(flat.size * 4 + ids.size * 4 + w1_bf.size * 2
                        + w1_id.size * 4 + b1.size * 4 + w2.size * 4
                        + b2.size * 4 + b_pad * out_dim * 4),
    )

    out = pl.pallas_call(
        mix_kernel,
        out_shape=jax.ShapeDtypeStruct((b_pad, out_dim), jnp.float32),
        grid=(num_tiles,),
        in_specs=[
            pl.BlockSpec((tile_b, 1), lambda i: (i, 0)),        # seeker ids (int32)
            pl.BlockSpec((tile_b, D), lambda i: (i, 0)),        # f32 frames (bf16 cast in-kernel)
            pl.BlockSpec((D, H2), lambda i: (0, 0)),            # fused W1 bf16, grid-invariant
            pl.BlockSpec((S, H2), lambda i: (0, 0)),            # id-bias table, grid-invariant
            pl.BlockSpec((1, H2), lambda i: (0, 0)),            # fused b1, grid-invariant
            pl.BlockSpec((H2, out_dim), lambda i: (0, 0)),      # block-diag W2, grid-invariant
            pl.BlockSpec((1, out_dim), lambda i: (0, 0)),       # fused b2, grid-invariant
        ],
        out_specs=pl.BlockSpec((tile_b, out_dim), lambda i: (i, 0)),
        compiler_params=pltpu.CompilerParams(
            dimension_semantics=("parallel",)),
        cost_estimate=cost,
    )(ids, flat, w1_bf, w1_id, b1, w2, b2)

    return out[:B] if b_pad != B else out


def init_params(key, feat_dim, hidden, action_dim):
    """Deterministic synthetic per-head parameters (biases kept 2D for TPU layout)."""
    ks = jax.random.split(key, 8)
    s1 = 1.0 / jnp.sqrt(feat_dim)
    s2 = 1.0 / jnp.sqrt(hidden)
    w1b = jax.random.uniform(ks[0], (feat_dim, hidden), jnp.float32, -s1, s1)
    b1b = jax.random.uniform(ks[1], (1, hidden), jnp.float32, -s1, s1)
    w2b = jax.random.uniform(ks[2], (hidden, action_dim), jnp.float32, -s2, s2)
    b2b = jax.random.uniform(ks[3], (1, action_dim), jnp.float32, -s2, s2)
    w1a = jax.random.uniform(ks[4], (feat_dim, hidden), jnp.float32, -s1, s1)
    b1a = jax.random.uniform(ks[5], (1, hidden), jnp.float32, -s1, s1)
    w2a = jax.random.uniform(ks[6], (hidden, action_dim), jnp.float32, -s2, s2)
    b2a = jax.random.uniform(ks[7], (1, action_dim), jnp.float32, -s2, s2)
    return (w1b, b1b, w2b, b2b, w1a, b1a, w2a, b2a)


def mix_reference_f32(x, seeker_id, params, num_of_seekers):
    """Original-semantics full-f32 reference: cat(base(x,id), addon(x,id), dim=1)."""
    B = x.shape[0]
    flat = x.reshape(B, -1).astype(jnp.float32)
    feat = jnp.concatenate(
        [flat, jax.nn.one_hot(seeker_id, num_of_seekers, dtype=jnp.float32)], axis=1)
    (w1b, b1b, w2b, b2b, w1a, b1a, w2a, b2a) = params

    def head(w1, b1, w2, b2):
        return jnp.maximum(feat @ w1 + b1, 0.0) @ w2 + b2

    return jnp.concatenate([head(w1b, b1b, w2b, b2b), head(w1a, b1a, w2a, b2a)], axis=1)


def mix_reference_matched(x, seeker_id, packed):
    """Pure-JAX reference mirroring the kernel's fused math and bf16 W1/feat precision."""
    w1_bf, w1_id, b1, w2, b2 = packed
    B = x.shape[0]
    flat = x.reshape(B, -1).astype(jnp.bfloat16).astype(jnp.float32)
    bias1 = b1 + w1_id[seeker_id]
    h = jnp.maximum(flat @ w1_bf.astype(jnp.float32) + bias1, 0.0)
    return h @ w2 + b2


if __name__ == "__main__":
    # Module-implied hyperparameters (small): num_of_frames -> channels,
    # num_of_seekers -> one-hot id width.
    batch = 2
    num_of_frames = 4          # channels (C)
    spatial = 16               # H = W
    num_of_seekers = 2
    hidden = 128
    action_dim = 8             # per-policy output width; Mix output = 2 * action_dim

    key = jax.random.PRNGKey(0)
    kx, kid, kp = jax.random.split(key, 3)

    x = jax.random.normal(kx, (batch, num_of_frames, spatial, spatial), jnp.float32)
    seeker_id = jax.random.randint(kid, (batch,), 0, num_of_seekers)

    flat_dim = num_of_frames * spatial * spatial          # 1024 — lane aligned
    feat_dim = flat_dim + num_of_seekers                  # per-head weights span D + S
    params = init_params(kp, feat_dim, hidden, action_dim)

    # Pack once (outside any step loop): fused bf16 W1 + id-bias table + block-diag W2.
    packed = pack_mix_params(params, flat_dim)

    out = mix_forward(x, seeker_id, packed, tile_b=8)
    out = jax.block_until_ready(out)

    assert out.shape == (batch, 2 * action_dim)

    # Tight check vs a precision-matched (bf16 W1/feat) reference.
    ref_m = mix_reference_matched(x, seeker_id, packed)
    assert jnp.allclose(out, ref_m, atol=1e-2, rtol=1e-2)

    # Loose check vs the original full-f32 per-head semantics (bf16 W1 cast tolerance).
    ref_f = mix_reference_f32(x, seeker_id, params, num_of_seekers)
    assert jnp.allclose(out, ref_f, atol=5e-2, rtol=5e-2)

    print("KERNEL_OK")
</pallas_src>

<mosaic_0001>
module attributes {stable_mosaic.version = 11 : i64} {
  func.func @mix_kernel(%arg0: i32, %arg1: memref<8x1xi32, #tpu.memory_space<vmem>>, %arg2: memref<8x1024xf32, #tpu.memory_space<vmem>>, %arg3: memref<1024x256xbf16, #tpu.memory_space<vmem>>, %arg4: memref<2x256xf32, #tpu.memory_space<vmem>>, %arg5: memref<1x256xf32, #tpu.memory_space<vmem>>, %arg6: memref<256x16xf32, #tpu.memory_space<vmem>>, %arg7: memref<1x16xf32, #tpu.memory_space<vmem>>, %arg8: memref<8x16xf32, #tpu.memory_space<vmem>>) attributes {dimension_semantics = [#tpu.dimension_semantics<parallel>], iteration_bounds = array<i64: 1>, scalar_prefetch = 0 : i64, scratch_operands = 0 : i64, tpu.core_type = #tpu.core_type<tc>, window_params = [{transform_indices = @transform_0, window_bounds = array<i64: 8, 1>}, {transform_indices = @transform_1, window_bounds = array<i64: 8, 1024>}, {pipeline_mode = #tpu.pipeline_mode<synchronous>, transform_indices = @transform_2, window_bounds = array<i64: 1024, 256>}, {pipeline_mode = #tpu.pipeline_mode<synchronous>, transform_indices = @transform_3, window_bounds = array<i64: 2, 256>}, {pipeline_mode = #tpu.pipeline_mode<synchronous>, transform_indices = @transform_4, window_bounds = array<i64: 1, 256>}, {pipeline_mode = #tpu.pipeline_mode<synchronous>, transform_indices = @transform_5, window_bounds = array<i64: 256, 16>}, {pipeline_mode = #tpu.pipeline_mode<synchronous>, transform_indices = @transform_6, window_bounds = array<i64: 1, 16>}, {transform_indices = @transform_7, window_bounds = array<i64: 8, 16>}]} {
    %c0 = arith.constant 0 : index
    %c0_0 = arith.constant 0 : index
    %0 = vector.load %arg2[%c0, %c0_0] : memref<8x1024xf32, #tpu.memory_space<vmem>>, vector<8x1024xf32>
    %1 = arith.truncf %0 : vector<8x1024xf32> to vector<8x1024xbf16>
    %c0_1 = arith.constant 0 : index
    %c0_2 = arith.constant 0 : index
    %2 = vector.load %arg3[%c0_1, %c0_2] : memref<1024x256xbf16, #tpu.memory_space<vmem>>, vector<1024x256xbf16>
    %cst = arith.constant dense<0.000000e+00> : vector<8x256xf32>
    %3 = tpu.matmul %1, %2, %cst {dimension_numbers = #tpu.dot_dimension_numbers<[1], [0], [0], [1], [0, 0, 1, 1], [], []>} : vector<8x1024xbf16>, vector<1024x256xbf16>, vector<8x256xf32> -> vector<8x256xf32>
    %c0_3 = arith.constant 0 : index
    %c0_4 = arith.constant 0 : index
    %4 = vector.load %arg1[%c0_3, %c0_4] : memref<8x1xi32, #tpu.memory_space<vmem>>, vector<8x1xi32>
    %c0_5 = arith.constant 0 : index
    %c0_6 = arith.constant 0 : index
    %5 = vector.load %arg4[%c0_5, %c0_6] : memref<2x256xf32, #tpu.memory_space<vmem>>, vector<2x256xf32>
    %c0_7 = arith.constant 0 : index
    %c0_8 = arith.constant 0 : index
    %6 = vector.load %arg5[%c0_7, %c0_8] : memref<1x256xf32, #tpu.memory_space<vmem>>, vector<1x256xf32>
    %c0_i32 = arith.constant 0 : i32
    %7 = vector.broadcast %c0_i32 : i32 to vector<8x1xi32>
    %8 = arith.cmpi eq, %4, %7 : vector<8x1xi32>
    %cst_9 = arith.constant 1.000000e+00 : f32
    %cst_10 = arith.constant 0.000000e+00 : f32
    %9 = vector.broadcast %cst_9 : f32 to vector<8x1xf32>
    %10 = vector.broadcast %cst_10 : f32 to vector<8x1xf32>
    %11 = arith.select %8, %9, %10 : vector<8x1xi1>, vector<8x1xf32>
    %12 = vector.extract_strided_slice %5 {offsets = [0, 0], sizes = [1, 256], strides = [1, 1]} : vector<2x256xf32> to vector<1x256xf32>
    %13 = vector.broadcast %11 : vector<8x1xf32> to vector<8x256xf32>
    %14 = vector.broadcast %12 : vector<1x256xf32> to vector<8x256xf32>
    %15 = arith.mulf %13, %14 : vector<8x256xf32>
    %16 = vector.broadcast %6 : vector<1x256xf32> to vector<8x256xf32>
    %17 = arith.addf %16, %15 : vector<8x256xf32>
    %c1_i32 = arith.constant 1 : i32
    %18 = vector.broadcast %c1_i32 : i32 to vector<8x1xi32>
    %19 = arith.cmpi eq, %4, %18 : vector<8x1xi32>
    %cst_11 = arith.constant 1.000000e+00 : f32
    %cst_12 = arith.constant 0.000000e+00 : f32
    %20 = vector.broadcast %cst_11 : f32 to vector<8x1xf32>
    %21 = vector.broadcast %cst_12 : f32 to vector<8x1xf32>
    %22 = arith.select %19, %20, %21 : vector<8x1xi1>, vector<8x1xf32>
    %23 = vector.extract_strided_slice %5 {offsets = [1, 0], sizes = [1, 256], strides = [1, 1]} : vector<2x256xf32> to vector<1x256xf32>
    %24 = vector.broadcast %22 : vector<8x1xf32> to vector<8x256xf32>
    %25 = vector.broadcast %23 : vector<1x256xf32> to vector<8x256xf32>
    %26 = arith.mulf %24, %25 : vector<8x256xf32>
    %27 = arith.addf %17, %26 : vector<8x256xf32>
    %28 = arith.addf %3, %27 : vector<8x256xf32>
    %cst_13 = arith.constant 0.000000e+00 : f32
    %29 = vector.broadcast %cst_13 : f32 to vector<8x256xf32>
    %30 = arith.maximumf %28, %29 : vector<8x256xf32>
    %c0_14 = arith.constant 0 : index
    %c0_15 = arith.constant 0 : index
    %31 = vector.load %arg6[%c0_14, %c0_15] : memref<256x16xf32, #tpu.memory_space<vmem>>, vector<256x16xf32>
    %cst_16 = arith.constant dense<0.000000e+00> : vector<8x16xf32>
    %32 = tpu.matmul %30, %31, %cst_16 {dimension_numbers = #tpu.dot_dimension_numbers<[1], [0], [0], [1], [0, 0, 1, 1], [], []>} : vector<8x256xf32>, vector<256x16xf32>, vector<8x16xf32> -> vector<8x16xf32>
    %c0_17 = arith.constant 0 : index
    %c0_18 = arith.constant 0 : index
    %33 = vector.load %arg7[%c0_17, %c0_18] : memref<1x16xf32, #tpu.memory_space<vmem>>, vector<1x16xf32>
    %34 = vector.broadcast %33 : vector<1x16xf32> to vector<8x16xf32>
    %35 = arith.addf %32, %34 : vector<8x16xf32>
    %c0_19 = arith.constant 0 : index
    %c0_20 = arith.constant 0 : index
    %36 = vector.load %arg8[%c0_19, %c0_20] : memref<8x16xf32, #tpu.memory_space<vmem>>, vector<8x16xf32>
    tpu.vector_store %arg8[%c0_19, %c0_20], %35 {strides = array<i32>} : memref<8x16xf32, #tpu.memory_space<vmem>>, vector<8x16xf32>,
    return
  }
  func.func @transform_0(%arg0: i32) -> (i32, i32) {
    %c0_i32 = arith.constant 0 : i32
    %c0_i32_0 = arith.constant 0 : i32
    return %arg0, %c0_i32 : i32, i32
  }
  func.func @transform_1(%arg0: i32) -> (i32, i32) {
    %c0_i32 = arith.constant 0 : i32
    %c0_i32_0 = arith.constant 0 : i32
    return %arg0, %c0_i32 : i32, i32
  }
  func.func @transform_2(%arg0: i32) -> (i32, i32) {
    %c0_i32 = arith.constant 0 : i32
    %c0_i32_0 = arith.constant 0 : i32
    %c0_i32_1 = arith.constant 0 : i32
    return %c0_i32, %c0_i32_0 : i32, i32
  }
  func.func @transform_3(%arg0: i32) -> (i32, i32) {
    %c0_i32 = arith.constant 0 : i32
    %c0_i32_0 = arith.constant 0 : i32
    %c0_i32_1 = arith.constant 0 : i32
    return %c0_i32, %c0_i32_0 : i32, i32
  }
  func.func @transform_4(%arg0: i32) -> (i32, i32) {
    %c0_i32 = arith.constant 0 : i32
    %c0_i32_0 = arith.constant 0 : i32
    %c0_i32_1 = arith.constant 0 : i32
    return %c0_i32, %c0_i32_0 : i32, i32
  }
  func.func @transform_5(%arg0: i32) -> (i32, i32) {
    %c0_i32 = arith.constant 0 : i32
    %c0_i32_0 = arith.constant 0 : i32
    %c0_i32_1 = arith.constant 0 : i32
    return %c0_i32, %c0_i32_0 : i32, i32
  }
  func.func @transform_6(%arg0: i32) -> (i32, i32) {
    %c0_i32 = arith.constant 0 : i32
    %c0_i32_0 = arith.constant 0 : i32
    %c0_i32_1 = arith.constant 0 : i32
    return %c0_i32, %c0_i32_0 : i32, i32
  }
  func.func @transform_7(%arg0: i32) -> (i32, i32) {
    %c0_i32 = arith.constant 0 : i32
    %c0_i32_0 = arith.constant 0 : i32
    return %arg0, %c0_i32 : i32, i32
  }
}

</mosaic_0001>

<llo_original>
// kernel: tpu_custom_call.1
$region0: #{tpu_custom_call.1}
  #allocation0 [shape = 'u32[]', space=smem, size = 0x4, offset = 0x4, fixed_abs, tag = 'smem constant byte address 0x4 - core index']
  #allocation1 [shape = 'u32[144,128]{1,0:T(1,128)}', space=vmem, size = 0x12000, scoped, tag = 'internal scratch']
  %s0 = inlined_call_operand.vmem [shape: s32[8,1], index: 0, kind: input, shape index: {}]
  %s1 = inlined_call_operand.vmem [shape: f32[8,1024], index: 1, kind: input, shape index: {}]
  %s2 = inlined_call_operand.hbm [shape: bf16[1024,256], index: 2, kind: input, shape index: {}]
  %s3 = inlined_call_operand.vmem [shape: f32[2,256], index: 3, kind: input, shape index: {}]
  %s4 = inlined_call_operand.vmem [shape: f32[1,256], index: 4, kind: input, shape index: {}]
  %s5 = inlined_call_operand.vmem [shape: f32[256,16], index: 5, kind: input, shape index: {}]
  %s6 = inlined_call_operand.vmem [shape: f32[1,16], index: 6, kind: input, shape index: {}]
  %s7 = inlined_call_operand.hbm [shape: f32[8,16], index: 7, kind: output, shape index: {}]
  %s8 = sld [smem:[#allocation0]]
  $region42: #{tpu_custom_call.1} parent=0
    _
  %s10 = ssub.s32 1, %s8
  %s11 = scalar_select 0, %s10, %s8
  $region1: #{tpu_custom_call.1} parent=0
    #allocation2 [shape = 'u8[524288]{0}', space=vmem, size = 0x80000, scoped, tag = 'input window, operand 2, single buffered']
    #allocation3 [shape = 's32[1]{0}', space=sflag, size = 0x4, scoped, tag = 'scoped memory for tpu_custom_call.1']
    #allocation4 [shape = 's32[1]{0}', space=sflag, size = 0x4, scoped, tag = 'scoped memory for tpu_custom_call.1']
    #allocation5 [shape = 'u8[4096]{0}', space=vmem, size = 0x1000, scoped, tag = 'output window, operand 0, single buffered']
    %12 = vsyncpa [#allocation3], 0
    %13 = vsyncpa [#allocation4], 0
    // Predicated region
    $region2: #{tpu_custom_call.1} parent=1 // pred_check
      _
    $region3: #{tpu_custom_call.1} parent=1 // pred_check_branch
      %15 = sbr.rel (0) target = $region5
    $region4: #{tpu_custom_call.1} parent=1 // pred_region
      _
    $region5: #{tpu_custom_call.1} parent=1 // pred_fallthru
      _
    // Predicated region
    $region6: #{tpu_custom_call.1} parent=1 // pred_check
      _
    $region7: #{tpu_custom_call.1} parent=1 // pred_check_branch
      %17 = sbr.rel (0) target = $region9
    $region8: #{tpu_custom_call.1} parent=1 // pred_region
      _
    $region9: #{tpu_custom_call.1} parent=1 // pred_fallthru
      _
    // Predicated region
    $region10: #{tpu_custom_call.1} parent=1 // pred_check
      _
    $region11: #{tpu_custom_call.1} parent=1 // pred_check_branch
      %19 = sbr.rel (0) target = $region13
    $region12: #{tpu_custom_call.1} parent=1 // pred_region
      %s21 = ssub.s32 16384, 16384
      %22 = vsyncadd [#allocation3], %s21
      %s23 = sshll.u32 [#allocation2], 4
      %s24 = int_to_ptr.vmem [resolvable:$true] %s23
      %29 = dma.hbm_to_vmem [thread:$0]  %s2, 16384, %s24, [#allocation3], 128, 128, 8
    $region13: #{tpu_custom_call.1} parent=1 // pred_fallthru
      _
    // Predicated region
    $region14: #{tpu_custom_call.1} parent=1 // pred_check
      _
    $region15: #{tpu_custom_call.1} parent=1 // pred_check_branch
      %31 = sbr.rel (0) target = $region17
    $region16: #{tpu_custom_call.1} parent=1 // pred_region
      _
    $region17: #{tpu_custom_call.1} parent=1 // pred_fallthru
      _
    // Predicated region
    $region18: #{tpu_custom_call.1} parent=1 // pred_check
      _
    $region19: #{tpu_custom_call.1} parent=1 // pred_check_branch
      %33 = sbr.rel (0) target = $region21
    $region20: #{tpu_custom_call.1} parent=1 // pred_region
      _
    $region21: #{tpu_custom_call.1} parent=1 // pred_fallthru
      _
    // Predicated region
    $region22: #{tpu_custom_call.1} parent=1 // pred_check
      _
    $region23: #{tpu_custom_call.1} parent=1 // pred_check_branch
      %35 = sbr.rel (0) target = $region25
    $region24: #{tpu_custom_call.1} parent=1 // pred_region
      _
    $region25: #{tpu_custom_call.1} parent=1 // pred_fallthru
      _
    // Predicated region
    $region26: #{tpu_custom_call.1} parent=1 // pred_check
      _
    $region27: #{tpu_custom_call.1} parent=1 // pred_check_branch
      %37 = sbr.rel (0) target = $region29
    $region28: #{tpu_custom_call.1} parent=1 // pred_region
      _
    $region29: #{tpu_custom_call.1} parent=1 // pred_fallthru
      _
    // Predicated region
    $region30: #{tpu_custom_call.1} parent=1 // pred_check
      _
    $region31: #{tpu_custom_call.1} parent=1 // pred_check_branch
      %39 = sbr.rel (0) target = $region33
    $region32: #{tpu_custom_call.1} parent=1 // pred_region
      %40 = dma.done [#allocation3], 16384
    $region33: #{tpu_custom_call.1} parent=1 // pred_fallthru
      _
    %v41 = vld [vmem:[%s1] sm:$0xff]
    %v42 = vld [vmem:[%s1 + $0x8] sm:$0xff]
    %v43 = vld [vmem:[%s1 + $0x10] sm:$0xff]
    %v44 = vld [vmem:[%s1 + $0x18] sm:$0xff]
    %v45 = vld [vmem:[%s1 + $0x20] sm:$0xff]
    %v46 = vld [vmem:[%s1 + $0x28] sm:$0xff]
    %v47 = vld [vmem:[%s1 + $0x30] sm:$0xff]
    %v48 = vld [vmem:[%s1 + $0x38] sm:$0xff]
    %v49 = vpack.c.bf16 %v41, %v41
    %v50 = vpack.c.bf16 %v42, %v42
    %v51 = vpack.c.bf16 %v43, %v43
    %v52 = vpack.c.bf16 %v44, %v44
    %v53 = vpack.c.bf16 %v45, %v45
    %v54 = vpack.c.bf16 %v46, %v46
    %v55 = vpack.c.bf16 %v47, %v47
    %v56 = vpack.c.bf16 %v48, %v48
    %v57 = vld [vmem:[#allocation2] sm:$0xff]
    %v58 = vld [vmem:[#allocation2 + $0x8] sm:$0xff]
    %v59 = vld [vmem:[#allocation2 + $0x10] sm:$0xff]
    %v60 = vld [vmem:[#allocation2 + $0x18] sm:$0xff]
    %v61 = vld [vmem:[#allocation2 + $0x20] sm:$0xff]
    %v62 = vld [vmem:[#allocation2 + $0x28] sm:$0xff]
    %v63 = vld [vmem:[#allocation2 + $0x30] sm:$0xff]
    %v64 = vld [vmem:[#allocation2 + $0x38] sm:$0xff]
    %v65 = vld [vmem:[#allocation2 + $0x40] sm:$0xff]
    %v66 = vld [vmem:[#allocation2 + $0x48] sm:$0xff]
    %v67 = vld [vmem:[#allocation2 + $0x50] sm:$0xff]
    %v68 = vld [vmem:[#allocation2 + $0x58] sm:$0xff]
    %v69 = vld [vmem:[#allocation2 + $0x60] sm:$0xff]
    %v70 = vld [vmem:[#allocation2 + $0x68] sm:$0xff]
    %v71 = vld [vmem:[#allocation2 + $0x70] sm:$0xff]
    %v72 = vld [vmem:[#allocation2 + $0x78] sm:$0xff]
    %v73 = vld [vmem:[#allocation2 + $0x80] sm:$0xff]
    %v74 = vld [vmem:[#allocation2 + $0x88] sm:$0xff]
    %v75 = vld [vmem:[#allocation2 + $0x90] sm:$0xff]
    %v76 = vld [vmem:[#allocation2 + $0x98] sm:$0xff]
    %v77 = vld [vmem:[#allocation2 + $0xa0] sm:$0xff]
    %v78 = vld [vmem:[#allocation2 + $0xa8] sm:$0xff]
    %v79 = vld [vmem:[#allocation2 + $0xb0] sm:$0xff]
    %v80 = vld [vmem:[#allocation2 + $0xb8] sm:$0xff]
    %v81 = vld [vmem:[#allocation2 + $0xc0] sm:$0xff]
    %v82 = vld [vmem:[#allocation2 + $0xc8] sm:$0xff]
    %v83 = vld [vmem:[#allocation2 + $0xd0] sm:$0xff]
    %v84 = vld [vmem:[#allocation2 + $0xd8] sm:$0xff]
    %v85 = vld [vmem:[#allocation2 + $0xe0] sm:$0xff]
    %v86 = vld [vmem:[#allocation2 + $0xe8] sm:$0xff]
    %v87 = vld [vmem:[#allocation2 + $0xf0] sm:$0xff]
    %v88 = vld [vmem:[#allocation2 + $0xf8] sm:$0xff]
    %v89 = vld [vmem:[#allocation2 + $0x100] sm:$0xff]
    %v90 = vld [vmem:[#allocation2 + $0x108] sm:$0xff]
    %v91 = vld [vmem:[#allocation2 + $0x110] sm:$0xff]
    %v92 = vld [vmem:[#allocation2 + $0x118] sm:$0xff]
    %v93 = vld [vmem:[#allocation2 + $0x120] sm:$0xff]
    %v94 = vld [vmem:[#allocation2 + $0x128] sm:$0xff]
    %v95 = vld [vmem:[#allocation2 + $0x130] sm:$0xff]
    %v96 = vld [vmem:[#allocation2 + $0x138] sm:$0xff]
    %v97 = vld [vmem:[#allocation2 + $0x140] sm:$0xff]
    %v98 = vld [vmem:[#allocation2 + $0x148] sm:$0xff]
    %v99 = vld [vmem:[#allocation2 + $0x150] sm:$0xff]
    %v100 = vld [vmem:[#allocation2 + $0x158] sm:$0xff]
    %v101 = vld [vmem:[#allocation2 + $0x160] sm:$0xff]
    %v102 = vld [vmem:[#allocation2 + $0x168] sm:$0xff]
    %v103 = vld [vmem:[#allocation2 + $0x170] sm:$0xff]
    %v104 = vld [vmem:[#allocation2 + $0x178] sm:$0xff]
    %v105 = vld [vmem:[#allocation2 + $0x180] sm:$0xff]
    %v106 = vld [vmem:[#allocation2 + $0x188] sm:$0xff]
    %v107 = vld [vmem:[#allocation2 + $0x190] sm:$0xff]
    %v108 = vld [vmem:[#allocation2 + $0x198] sm:$0xff]
    %v109 = vld [vmem:[#allocation2 + $0x1a0] sm:$0xff]
    %v110 = vld [vmem:[#allocation2 + $0x1a8] sm:$0xff]
    %v111 = vld [vmem:[#allocation2 + $0x1b0] sm:$0xff]
    %v112 = vld [vmem:[#allocation2 + $0x1b8] sm:$0xff]
    %v113 = vld [vmem:[#allocation2 + $0x1c0] sm:$0xff]
    %v114 = vld [vmem:[#allocation2 + $0x1c8] sm:$0xff]
    %v115 = vld [vmem:[#allocation2 + $0x1d0] sm:$0xff]
    %v116 = vld [vmem:[#allocation2 + $0x1d8] sm:$0xff]
    %v117 = vld [vmem:[#allocation2 + $0x1e0] sm:$0xff]
    %v118 = vld [vmem:[#allocation2 + $0x1e8] sm:$0xff]
    %v119 = vld [vmem:[#allocation2 + $0x1f0] sm:$0xff]
    %v120 = vld [vmem:[#allocation2 + $0x1f8] sm:$0xff]
    %v121 = vld [vmem:[#allocation2 + $0x200] sm:$0xff]
    %v122 = vld [vmem:[#allocation2 + $0x208] sm:$0xff]
    %v123 = vld [vmem:[#allocation2 + $0x210] sm:$0xff]
    %v124 = vld [vmem:[#allocation2 + $0x218] sm:$0xff]
    %v125 = vld [vmem:[#allocation2 + $0x220] sm:$0xff]
    %v126 = vld [vmem:[#allocation2 + $0x228] sm:$0xff]
    %v127 = vld [vmem:[#allocation2 + $0x230] sm:$0xff]
    %v128 = vld [vmem:[#allocation2 + $0x238] sm:$0xff]
    %v129 = vld [vmem:[#allocation2 + $0x240] sm:$0xff]
    %v130 = vld [vmem:[#allocation2 + $0x248] sm:$0xff]
    %v131 = vld [vmem:[#allocation2 + $0x250] sm:$0xff]
    %v132 = vld [vmem:[#allocation2 + $0x258] sm:$0xff]
    %v133 = vld [vmem:[#allocation2 + $0x260] sm:$0xff]
    %v134 = vld [vmem:[#allocation2 + $0x268] sm:$0xff]
    %v135 = vld [vmem:[#allocation2 + $0x270] sm:$0xff]
    %v136 = vld [vmem:[#allocation2 + $0x278] sm:$0xff]
    %v137 = vld [vmem:[#allocation2 + $0x280] sm:$0xff]
    %v138 = vld [vmem:[#allocation2 + $0x288] sm:$0xff]
    %v139 = vld [vmem:[#allocation2 + $0x290] sm:$0xff]
    %v140 = vld [vmem:[#allocation2 + $0x298] sm:$0xff]
    %v141 = vld [vmem:[#allocation2 + $0x2a0] sm:$0xff]
    %v142 = vld [vmem:[#allocation2 + $0x2a8] sm:$0xff]
    %v143 = vld [vmem:[#allocation2 + $0x2b0] sm:$0xff]
    %v144 = vld [vmem:[#allocation2 + $0x2b8] sm:$0xff]
    %v145 = vld [vmem:[#allocation2 + $0x2c0] sm:$0xff]
    %v146 = vld [vmem:[#allocation2 + $0x2c8] sm:$0xff]
    %v147 = vld [vmem:[#allocation2 + $0x2d0] sm:$0xff]
    %v148 = vld [vmem:[#allocation2 + $0x2d8] sm:$0xff]
    %v149 = vld [vmem:[#allocation2 + $0x2e0] sm:$0xff]
    %v150 = vld [vmem:[#allocation2 + $0x2e8] sm:$0xff]
    %v151 = vld [vmem:[#allocation2 + $0x2f0] sm:$0xff]
    %v152 = vld [vmem:[#allocation2 + $0x2f8] sm:$0xff]
    %v153 = vld [vmem:[#allocation2 + $0x300] sm:$0xff]
    %v154 = vld [vmem:[#allocation2 + $0x308] sm:$0xff]
    %v155 = vld [vmem:[#allocation2 + $0x310] sm:$0xff]
    %v156 = vld [vmem:[#allocation2 + $0x318] sm:$0xff]
    %v157 = vld [vmem:[#allocation2 + $0x320] sm:$0xff]
    %v158 = vld [vmem:[#allocation2 + $0x328] sm:$0xff]
    %v159 = vld [vmem:[#allocation2 + $0x330] sm:$0xff]
    %v160 = vld [vmem:[#allocation2 + $0x338] sm:$0xff]
    %v161 = vld [vmem:[#allocation2 + $0x340] sm:$0xff]
    %v162 = vld [vmem:[#allocation2 + $0x348] sm:$0xff]
    %v163 = vld [vmem:[#allocation2 + $0x350] sm:$0xff]
    %v164 = vld [vmem:[#allocation2 + $0x358] sm:$0xff]
    %v165 = vld [vmem:[#allocation2 + $0x360] sm:$0xff]
    %v166 = vld [vmem:[#allocation2 + $0x368] sm:$0xff]
    %v167 = vld [vmem:[#allocation2 + $0x370] sm:$0xff]
    %v168 = vld [vmem:[#allocation2 + $0x378] sm:$0xff]
    %v169 = vld [vmem:[#allocation2 + $0x380] sm:$0xff]
    %v170 = vld [vmem:[#allocation2 + $0x388] sm:$0xff]
    %v171 = vld [vmem:[#allocation2 + $0x390] sm:$0xff]
    %v172 = vld [vmem:[#allocation2 + $0x398] sm:$0xff]
    %v173 = vld [vmem:[#allocation2 + $0x3a0] sm:$0xff]
    %v174 = vld [vmem:[#allocation2 + $0x3a8] sm:$0xff]
    %v175 = vld [vmem:[#allocation2 + $0x3b0] sm:$0xff]
    %v176 = vld [vmem:[#allocation2 + $0x3b8] sm:$0xff]
    %v177 = vld [vmem:[#allocation2 + $0x3c0] sm:$0xff]
    %v178 = vld [vmem:[#allocation2 + $0x3c8] sm:$0xff]
    %v179 = vld [vmem:[#allocation2 + $0x3d0] sm:$0xff]
    %v180 = vld [vmem:[#allocation2 + $0x3d8] sm:$0xff]
    %v181 = vld [vmem:[#allocation2 + $0x3e0] sm:$0xff]
    %v182 = vld [vmem:[#allocation2 + $0x3e8] sm:$0xff]
    %v183 = vld [vmem:[#allocation2 + $0x3f0] sm:$0xff]
    %v184 = vld [vmem:[#allocation2 + $0x3f8] sm:$0xff]
    %v185 = vld [vmem:[%s0] sm:$0xff]
    %v186 = vld [vmem:[%s3] sm:$0xf]
    %v187 = vld [vmem:[%s4] sm:$0x3]
    %vm188 = vcmp.eq.s32.totalorder %v185, 0
    %v189 = vsel %vm188, 1.0, 0.0
    %191 = vset.pattern.permute.xlu0 0
    %192 = vperm.xlu0 %191, %v189
    %v193 = vpop.permute.xlu0 %192
    %v196 = vlaneseq
    %v197 = vshrl.u32 %v196, 7
    %v198 = vsub.s32 0, %v197
    %v199 = vrot.slane %v186, %v198
    %v200 = vlaneseq
    %v201 = vshrl.u32 %v200, 7
    %v202 = vsub.s32 2, %v201
    %v203 = vrot.slane %v186, %v202
    %v206 = vlaneseq
    %v207 = vshrl.u32 %v206, 7
    %v208 = vsub.s32 0, %v207
    %v209 = vrot.slane %v199, %v208
    %v210 = vlaneseq
    %v211 = vshrl.u32 %v210, 7
    %v212 = vsub.s32 0, %v211
    %v213 = vrot.slane %v203, %v212
    %v214 = vmul.f32 %v193, %v209
    %v215 = vmul.f32 %v193, %v213
    %v217 = vlaneseq
    %v218 = vshrl.u32 %v217, 7
    %v219 = vsub.s32 0, %v218
    %v220 = vrot.slane %v187, %v219
    %v221 = vlaneseq
    %v222 = vshrl.u32 %v221, 7
    %v223 = vsub.s32 1, %v222
    %v224 = vrot.slane %v187, %v223
    %v227 = vadd.f32 %v220, %v214
    %v228 = vadd.f32 %v224, %v215
    %vm229 = vcmp.eq.s32.totalorder %v185, 1
    %v230 = vsel %vm229, 1.0, 0.0
    %232 = vset.pattern.permute.xlu0 0
    %233 = vperm.xlu0 %232, %v230
    %v234 = vpop.permute.xlu0 %233
    %v236 = vlaneseq
    %v237 = vshrl.u32 %v236, 7
    %v238 = vsub.s32 1, %v237
    %v239 = vrot.slane %v186, %v238
    %v240 = vlaneseq
    %v241 = vshrl.u32 %v240, 7
    %v242 = vsub.s32 3, %v241
    %v243 = vrot.slane %v186, %v242
    %v246 = vlaneseq
    %v247 = vshrl.u32 %v246, 7
    %v248 = vsub.s32 1, %v247
    %v249 = vrot.slane %v239, %v248
    %v250 = vlaneseq
    %v251 = vshrl.u32 %v250, 7
    %v252 = vsub.s32 1, %v251
    %v253 = vrot.slane %v243, %v252
    %v254 = vmul.f32 %v234, %v249
    %v255 = vmul.f32 %v234, %v253
    %v256 = vadd.f32 %v227, %v254
    %v257 = vadd.f32 %v228, %v255
    %v386 = vunpack.c.l.b16 %v57
    %v387 = vunpack.c.h.b16 %v57
    %v388 = vunpack.c.l.b16 %v58
    %v389 = vunpack.c.h.b16 %v58
    %v390 = vunpack.c.l.b16 %v59
    %v391 = vunpack.c.h.b16 %v59
    %v392 = vunpack.c.l.b16 %v60
    %v393 = vunpack.c.h.b16 %v60
    %v394 = vunpack.c.l.b16 %v61
    %v395 = vunpack.c.h.b16 %v61
    %v396 = vunpack.c.l.b16 %v62
    %v397 = vunpack.c.h.b16 %v62
    %v398 = vunpack.c.l.b16 %v63
    %v399 = vunpack.c.h.b16 %v63
    %v400 = vunpack.c.l.b16 %v64
    %v401 = vunpack.c.h.b16 %v64
    %v402 = vunpack.c.l.b16 %v65
    %v403 = vunpack.c.h.b16 %v65
    %v404 = vunpack.c.l.b16 %v66
    %v405 = vunpack.c.h.b16 %v66
    %v406 = vunpack.c.l.b16 %v67
    %v407 = vunpack.c.h.b16 %v67
    %v408 = vunpack.c.l.b16 %v68
    %v409 = vunpack.c.h.b16 %v68
    %v410 = vunpack.c.l.b16 %v69
    %v411 = vunpack.c.h.b16 %v69
    %v412 = vunpack.c.l.b16 %v70
    %v413 = vunpack.c.h.b16 %v70
    %v414 = vunpack.c.l.b16 %v71
    %v415 = vunpack.c.h.b16 %v71
    %v416 = vunpack.c.l.b16 %v72
    %v417 = vunpack.c.h.b16 %v72
    %v418 = vunpack.c.l.b16 %v73
    %v419 = vunpack.c.h.b16 %v73
    %v420 = vunpack.c.l.b16 %v74
    %v421 = vunpack.c.h.b16 %v74
    %v422 = vunpack.c.l.b16 %v75
    %v423 = vunpack.c.h.b16 %v75
    %v424 = vunpack.c.l.b16 %v76
    %v425 = vunpack.c.h.b16 %v76
    %v426 = vunpack.c.l.b16 %v77
    %v427 = vunpack.c.h.b16 %v77
    %v428 = vunpack.c.l.b16 %v78
    %v429 = vunpack.c.h.b16 %v78
    %v430 = vunpack.c.l.b16 %v79
    %v431 = vunpack.c.h.b16 %v79
    %v432 = vunpack.c.l.b16 %v80
    %v433 = vunpack.c.h.b16 %v80
    %v434 = vunpack.c.l.b16 %v81
    %v435 = vunpack.c.h.b16 %v81
    %v436 = vunpack.c.l.b16 %v82
    %v437 = vunpack.c.h.b16 %v82
    %v438 = vunpack.c.l.b16 %v83
    %v439 = vunpack.c.h.b16 %v83
    %v440 = vunpack.c.l.b16 %v84
    %v441 = vunpack.c.h.b16 %v84
    %v442 = vunpack.c.l.b16 %v85
    %v443 = vunpack.c.h.b16 %v85
    %v444 = vunpack.c.l.b16 %v86
    %v445 = vunpack.c.h.b16 %v86
    %v446 = vunpack.c.l.b16 %v87
    %v447 = vunpack.c.h.b16 %v87
    %v448 = vunpack.c.l.b16 %v88
    %v449 = vunpack.c.h.b16 %v88
    %v450 = vunpack.c.l.b16 %v89
    %v451 = vunpack.c.h.b16 %v89
    %v452 = vunpack.c.l.b16 %v90
    %v453 = vunpack.c.h.b16 %v90
    %v454 = vunpack.c.l.b16 %v91
    %v455 = vunpack.c.h.b16 %v91
    %v456 = vunpack.c.l.b16 %v92
    %v457 = vunpack.c.h.b16 %v92
    %v458 = vunpack.c.l.b16 %v93
    %v459 = vunpack.c.h.b16 %v93
    %v460 = vunpack.c.l.b16 %v94
    %v461 = vunpack.c.h.b16 %v94
    %v462 = vunpack.c.l.b16 %v95
    %v463 = vunpack.c.h.b16 %v95
    %v464 = vunpack.c.l.b16 %v96
    %v465 = vunpack.c.h.b16 %v96
    %v466 = vunpack.c.l.b16 %v97
    %v467 = vunpack.c.h.b16 %v97
    %v468 = vunpack.c.l.b16 %v98
    %v469 = vunpack.c.h.b16 %v98
    %v470 = vunpack.c.l.b16 %v99
    %v471 = vunpack.c.h.b16 %v99
    %v472 = vunpack.c.l.b16 %v100
    %v473 = vunpack.c.h.b16 %v100
    %v474 = vunpack.c.l.b16 %v101
    %v475 = vunpack.c.h.b16 %v101
    %v476 = vunpack.c.l.b16 %v102
    %v477 = vunpack.c.h.b16 %v102
    %v478 = vunpack.c.l.b16 %v103
    %v479 = vunpack.c.h.b16 %v103
    %v480 = vunpack.c.l.b16 %v104
    %v481 = vunpack.c.h.b16 %v104
    %v482 = vunpack.c.l.b16 %v105
    %v483 = vunpack.c.h.b16 %v105
    %v484 = vunpack.c.l.b16 %v106
    %v485 = vunpack.c.h.b16 %v106
    %v486 = vunpack.c.l.b16 %v107
    %v487 = vunpack.c.h.b16 %v107
    %v488 = vunpack.c.l.b16 %v108
    %v489 = vunpack.c.h.b16 %v108
    %v490 = vunpack.c.l.b16 %v109
    %v491 = vunpack.c.h.b16 %v109
    %v492 = vunpack.c.l.b16 %v110
    %v493 = vunpack.c.h.b16 %v110
    %v494 = vunpack.c.l.b16 %v111
    %v495 = vunpack.c.h.b16 %v111
    %v496 = vunpack.c.l.b16 %v112
    %v497 = vunpack.c.h.b16 %v112
    %v498 = vunpack.c.l.b16 %v113
    %v499 = vunpack.c.h.b16 %v113
    %v500 = vunpack.c.l.b16 %v114
    %v501 = vunpack.c.h.b16 %v114
    %v502 = vunpack.c.l.b16 %v115
    %v503 = vunpack.c.h.b16 %v115
    %v504 = vunpack.c.l.b16 %v116
    %v505 = vunpack.c.h.b16 %v116
    %v506 = vunpack.c.l.b16 %v117
    %v507 = vunpack.c.h.b16 %v117
    %v508 = vunpack.c.l.b16 %v118
    %v509 = vunpack.c.h.b16 %v118
    %v510 = vunpack.c.l.b16 %v119
    %v511 = vunpack.c.h.b16 %v119
    %v512 = vunpack.c.l.b16 %v120
    %v513 = vunpack.c.h.b16 %v120
    %v514 = vunpack.c.l.b16 %v121
    %v515 = vunpack.c.h.b16 %v121
    %v516 = vunpack.c.l.b16 %v122
    %v517 = vunpack.c.h.b16 %v122
    %v518 = vunpack.c.l.b16 %v123
    %v519 = vunpack.c.h.b16 %v123
    %v520 = vunpack.c.l.b16 %v124
    %v521 = vunpack.c.h.b16 %v124
    %v522 = vunpack.c.l.b16 %v125
    %v523 = vunpack.c.h.b16 %v125
    %v524 = vunpack.c.l.b16 %v126
    %v525 = vunpack.c.h.b16 %v126
    %v526 = vunpack.c.l.b16 %v127
    %v527 = vunpack.c.h.b16 %v127
    %v528 = vunpack.c.l.b16 %v128
    %v529 = vunpack.c.h.b16 %v128
    %v530 = vunpack.c.l.b16 %v129
    %v531 = vunpack.c.h.b16 %v129
    %v532 = vunpack.c.l.b16 %v130
    %v533 = vunpack.c.h.b16 %v130
    %v534 = vunpack.c.l.b16 %v131
    %v535 = vunpack.c.h.b16 %v131
    %v536 = vunpack.c.l.b16 %v132
    %v537 = vunpack.c.h.b16 %v132
    %v538 = vunpack.c.l.b16 %v133
    %v539 = vunpack.c.h.b16 %v133
    %v540 = vunpack.c.l.b16 %v134
    %v541 = vunpack.c.h.b16 %v134
    %v542 = vunpack.c.l.b16 %v135
    %v543 = vunpack.c.h.b16 %v135
    %v544 = vunpack.c.l.b16 %v136
    %v545 = vunpack.c.h.b16 %v136
    %v546 = vunpack.c.l.b16 %v137
    %v547 = vunpack.c.h.b16 %v137
    %v548 = vunpack.c.l.b16 %v138
    %v549 = vunpack.c.h.b16 %v138
    %v550 = vunpack.c.l.b16 %v139
    %v551 = vunpack.c.h.b16 %v139
    %v552 = vunpack.c.l.b16 %v140
    %v553 = vunpack.c.h.b16 %v140
    %v554 = vunpack.c.l.b16 %v141
    %v555 = vunpack.c.h.b16 %v141
    %v556 = vunpack.c.l.b16 %v142
    %v557 = vunpack.c.h.b16 %v142
    %v558 = vunpack.c.l.b16 %v143
    %v559 = vunpack.c.h.b16 %v143
    %v560 = vunpack.c.l.b16 %v144
    %v561 = vunpack.c.h.b16 %v144
    %v562 = vunpack.c.l.b16 %v145
    %v563 = vunpack.c.h.b16 %v145
    %v564 = vunpack.c.l.b16 %v146
    %v565 = vunpack.c.h.b16 %v146
    %v566 = vunpack.c.l.b16 %v147
    %v567 = vunpack.c.h.b16 %v147
    %v568 = vunpack.c.l.b16 %v148
    %v569 = vunpack.c.h.b16 %v148
    %v570 = vunpack.c.l.b16 %v149
    %v571 = vunpack.c.h.b16 %v149
    %v572 = vunpack.c.l.b16 %v150
    %v573 = vunpack.c.h.b16 %v150
    %v574 = vunpack.c.l.b16 %v151
    %v575 = vunpack.c.h.b16 %v151
    %v576 = vunpack.c.l.b16 %v152
    %v577 = vunpack.c.h.b16 %v152
    %v578 = vunpack.c.l.b16 %v153
    %v579 = vunpack.c.h.b16 %v153
    %v580 = vunpack.c.l.b16 %v154
    %v581 = vunpack.c.h.b16 %v154
    %v582 = vunpack.c.l.b16 %v155
    %v583 = vunpack.c.h.b16 %v155
    %v584 = vunpack.c.l.b16 %v156
    %v585 = vunpack.c.h.b16 %v156
    %v586 = vunpack.c.l.b16 %v157
    %v587 = vunpack.c.h.b16 %v157
    %v588 = vunpack.c.l.b16 %v158
    %v589 = vunpack.c.h.b16 %v158
    %v590 = vunpack.c.l.b16 %v159
    %v591 = vunpack.c.h.b16 %v159
    %v592 = vunpack.c.l.b16 %v160
    %v593 = vunpack.c.h.b16 %v160
    %v594 = vunpack.c.l.b16 %v161
    %v595 = vunpack.c.h.b16 %v161
    %v596 = vunpack.c.l.b16 %v162
    %v597 = vunpack.c.h.b16 %v162
    %v598 = vunpack.c.l.b16 %v163
    %v599 = vunpack.c.h.b16 %v163
    %v600 = vunpack.c.l.b16 %v164
    %v601 = vunpack.c.h.b16 %v164
    %v602 = vunpack.c.l.b16 %v165
    %v603 = vunpack.c.h.b16 %v165
    %v604 = vunpack.c.l.b16 %v166
    %v605 = vunpack.c.h.b16 %v166
    %v606 = vunpack.c.l.b16 %v167
    %v607 = vunpack.c.h.b16 %v167
    %v608 = vunpack.c.l.b16 %v168
    %v609 = vunpack.c.h.b16 %v168
    %v610 = vunpack.c.l.b16 %v169
    %v611 = vunpack.c.h.b16 %v169
    %v612 = vunpack.c.l.b16 %v170
    %v613 = vunpack.c.h.b16 %v170
    %v614 = vunpack.c.l.b16 %v171
    %v615 = vunpack.c.h.b16 %v171
    %v616 = vunpack.c.l.b16 %v172
    %v617 = vunpack.c.h.b16 %v172
    %v618 = vunpack.c.l.b16 %v173
    %v619 = vunpack.c.h.b16 %v173
    %v620 = vunpack.c.l.b16 %v174
    %v621 = vunpack.c.h.b16 %v174
    %v622 = vunpack.c.l.b16 %v175
    %v623 = vunpack.c.h.b16 %v175
    %v624 = vunpack.c.l.b16 %v176
    %v625 = vunpack.c.h.b16 %v176
    %v626 = vunpack.c.l.b16 %v177
    %v627 = vunpack.c.h.b16 %v177
    %v628 = vunpack.c.l.b16 %v178
    %v629 = vunpack.c.h.b16 %v178
    %v630 = vunpack.c.l.b16 %v179
    %v631 = vunpack.c.h.b16 %v179
    %v632 = vunpack.c.l.b16 %v180
    %v633 = vunpack.c.h.b16 %v180
    %v634 = vunpack.c.l.b16 %v181
    %v635 = vunpack.c.h.b16 %v181
    %v636 = vunpack.c.l.b16 %v182
    %v637 = vunpack.c.h.b16 %v182
    %v638 = vunpack.c.l.b16 %v183
    %v639 = vunpack.c.h.b16 %v183
    %v640 = vunpack.c.l.b16 %v184
    %v641 = vunpack.c.h.b16 %v184
    %v642 = vpack.c.b16 %v388, %v386
    %v643 = vpack.c.b16 %v389, %v387
    %v644 = vpack.c.b16 %v392, %v390
    %v645 = vpack.c.b16 %v393, %v391
    %v646 = vpack.c.b16 %v396, %v394
    %v647 = vpack.c.b16 %v397, %v395
    %v648 = vpack.c.b16 %v400, %v398
    %v649 = vpack.c.b16 %v401, %v399
    %v650 = vpack.c.b16 %v404, %v402
    %v651 = vpack.c.b16 %v405, %v403
    %v652 = vpack.c.b16 %v408, %v406
    %v653 = vpack.c.b16 %v409, %v407
    %v654 = vpack.c.b16 %v412, %v410
    %v655 = vpack.c.b16 %v413, %v411
    %v656 = vpack.c.b16 %v416, %v414
    %v657 = vpack.c.b16 %v417, %v415
    %v658 = vpack.c.b16 %v420, %v418
    %v659 = vpack.c.b16 %v421, %v419
    %v660 = vpack.c.b16 %v424, %v422
    %v661 = vpack.c.b16 %v425, %v423
    %v662 = vpack.c.b16 %v428, %v426
    %v663 = vpack.c.b16 %v429, %v427
    %v664 = vpack.c.b16 %v432, %v430
    %v665 = vpack.c.b16 %v433, %v431
    %v666 = vpack.c.b16 %v436, %v434
    %v667 = vpack.c.b16 %v437, %v435
    %v668 = vpack.c.b16 %v440, %v438
    %v669 = vpack.c.b16 %v441, %v439
    %v670 = vpack.c.b16 %v444, %v442
    %v671 = vpack.c.b16 %v445, %v443
    %v672 = vpack.c.b16 %v448, %v446
    %v673 = vpack.c.b16 %v449, %v447
    %v674 = vpack.c.b16 %v452, %v450
    %v675 = vpack.c.b16 %v453, %v451
    %v676 = vpack.c.b16 %v456, %v454
    %v677 = vpack.c.b16 %v457, %v455
    %v678 = vpack.c.b16 %v460, %v458
    %v679 = vpack.c.b16 %v461, %v459
    %v680 = vpack.c.b16 %v464, %v462
    %v681 = vpack.c.b16 %v465, %v463
    %v682 = vpack.c.b16 %v468, %v466
    %v683 = vpack.c.b16 %v469, %v467
    %v684 = vpack.c.b16 %v472, %v470
    %v685 = vpack.c.b16 %v473, %v471
    %v686 = vpack.c.b16 %v476, %v474
    %v687 = vpack.c.b16 %v477, %v475
    %v688 = vpack.c.b16 %v480, %v478
    %v689 = vpack.c.b16 %v481, %v479
    %v690 = vpack.c.b16 %v484, %v482
    %v691 = vpack.c.b16 %v485, %v483
    %v692 = vpack.c.b16 %v488, %v486
    %v693 = vpack.c.b16 %v489, %v487
    %v694 = vpack.c.b16 %v492, %v490
    %v695 = vpack.c.b16 %v493, %v491
    %v696 = vpack.c.b16 %v496, %v494
    %v697 = vpack.c.b16 %v497, %v495
    %v698 = vpack.c.b16 %v500, %v498
    %v699 = vpack.c.b16 %v501, %v499
    %v700 = vpack.c.b16 %v504, %v502
    %v701 = vpack.c.b16 %v505, %v503
    %v702 = vpack.c.b16 %v508, %v506
    %v703 = vpack.c.b16 %v509, %v507
    %v704 = vpack.c.b16 %v512, %v510
    %v705 = vpack.c.b16 %v513, %v511
    %v706 = vpack.c.b16 %v516, %v514
    %v707 = vpack.c.b16 %v517, %v515
    %v708 = vpack.c.b16 %v520, %v518
    %v709 = vpack.c.b16 %v521, %v519
    %v710 = vpack.c.b16 %v524, %v522
    %v711 = vpack.c.b16 %v525, %v523
    %v712 = vpack.c.b16 %v528, %v526
    %v713 = vpack.c.b16 %v529, %v527
    %v714 = vpack.c.b16 %v532, %v530
    %v715 = vpack.c.b16 %v533, %v531
    %v716 = vpack.c.b16 %v536, %v534
    %v717 = vpack.c.b16 %v537, %v535
    %v718 = vpack.c.b16 %v540, %v538
    %v719 = vpack.c.b16 %v541, %v539
    %v720 = vpack.c.b16 %v544, %v542
    %v721 = vpack.c.b16 %v545, %v543
    %v722 = vpack.c.b16 %v548, %v546
    %v723 = vpack.c.b16 %v549, %v547
    %v724 = vpack.c.b16 %v552, %v550
    %v725 = vpack.c.b16 %v553, %v551
    %v726 = vpack.c.b16 %v556, %v554
    %v727 = vpack.c.b16 %v557, %v555
    %v728 = vpack.c.b16 %v560, %v558
    %v729 = vpack.c.b16 %v561, %v559
    %v730 = vpack.c.b16 %v564, %v562
    %v731 = vpack.c.b16 %v565, %v563
    %v732 = vpack.c.b16 %v568, %v566
    %v733 = vpack.c.b16 %v569, %v567
    %v734 = vpack.c.b16 %v572, %v570
    %v735 = vpack.c.b16 %v573, %v571
    %v736 = vpack.c.b16 %v576, %v574
    %v737 = vpack.c.b16 %v577, %v575
    %v738 = vpack.c.b16 %v580, %v578
    %v739 = vpack.c.b16 %v581, %v579
    %v740 = vpack.c.b16 %v584, %v582
    %v741 = vpack.c.b16 %v585, %v583
    %v742 = vpack.c.b16 %v588, %v586
    %v743 = vpack.c.b16 %v589, %v587
    %v744 = vpack.c.b16 %v592, %v590
    %v745 = vpack.c.b16 %v593, %v591
    %v746 = vpack.c.b16 %v596, %v594
    %v747 = vpack.c.b16 %v597, %v595
    %v748 = vpack.c.b16 %v600, %v598
    %v749 = vpack.c.b16 %v601, %v599
    %v750 = vpack.c.b16 %v604, %v602
    %v751 = vpack.c.b16 %v605, %v603
    %v752 = vpack.c.b16 %v608, %v606
    %v753 = vpack.c.b16 %v609, %v607
    %v754 = vpack.c.b16 %v612, %v610
    %v755 = vpack.c.b16 %v613, %v611
    %v756 = vpack.c.b16 %v616, %v614
    %v757 = vpack.c.b16 %v617, %v615
    %v758 = vpack.c.b16 %v620, %v618
    %v759 = vpack.c.b16 %v621, %v619
    %v760 = vpack.c.b16 %v624, %v622
    %v761 = vpack.c.b16 %v625, %v623
    %v762 = vpack.c.b16 %v628, %v626
    %v763 = vpack.c.b16 %v629, %v627
    %v764 = vpack.c.b16 %v632, %v630
    %v765 = vpack.c.b16 %v633, %v631
    %v766 = vpack.c.b16 %v636, %v634
    %v767 = vpack.c.b16 %v637, %v635
    %v768 = vpack.c.b16 %v640, %v638
    %v769 = vpack.c.b16 %v641, %v639
    %898 = vmatprep.subr.bf16.mxu0 %v643
    %899 = vmatpush1.bf16.msra.mxu0 %v642
    %900 = vmatprep.subr.bf16.mxu0 %v645
    %901 = vmatpush1.bf16.msra.mxu0 %v644
    %902 = vmatprep.subr.bf16.mxu0 %v647
    %903 = vmatpush1.bf16.msra.mxu0 %v646
    %904 = vmatprep.subr.bf16.mxu0 %v649
    %905 = vmatpush1.bf16.msra.mxu0 %v648
    %906 = vmatprep.subr.bf16.mxu0 %v651
    %907 = vmatpush1.bf16.msra.mxu0 %v650
    %908 = vmatprep.subr.bf16.mxu0 %v653
    %909 = vmatpush1.bf16.msra.mxu0 %v652
    %910 = vmatprep.subr.bf16.mxu0 %v655
    %911 = vmatpush1.bf16.msra.mxu0 %v654
    %912 = vmatprep.subr.bf16.mxu0 %v657
    %913 = vmatpush1.bf16.msra.mxu0 %v656
    %914 = vmatprep.subr.bf16.mxu0 %v659
    %915 = vmatpush1.bf16.msra.mxu0 %v658
    %916 = vmatprep.subr.bf16.mxu0 %v661
    %917 = vmatpush1.bf16.msra.mxu0 %v660
    %918 = vmatprep.subr.bf16.mxu0 %v663
    %919 = vmatpush1.bf16.msra.mxu0 %v662
    %920 = vmatprep.subr.bf16.mxu0 %v665
    %921 = vmatpush1.bf16.msra.mxu0 %v664
    %922 = vmatprep.subr.bf16.mxu0 %v667
    %923 = vmatpush1.bf16.msra.mxu0 %v666
    %924 = vmatprep.subr.bf16.mxu0 %v669
    %925 = vmatpush1.bf16.msra.mxu0 %v668
    %926 = vmatprep.subr.bf16.mxu0 %v671
    %927 = vmatpush1.bf16.msra.mxu0 %v670
    %928 = vmatprep.subr.bf16.mxu0 %v673
    %929 = vmatpush1.bf16.msra.mxu0 %v672
    %930 = vmatprep.mubr.bf16.mxu0 %v50
    %931 = vmatmul.mubr.bf16.gmra.mrb[0].mxu0 %v49
    %v932 = vpop.f32.mrb[0].mxu0
    %v933 = vadd.f32 %v256, %v932
    %v934 = vpop.f32.mrb[0].mxu0
    %v935 = vadd.f32 %v257, %v934
    %v936 = vpop.f32.mrb[0].mxu0
    %v937 = vpop.f32.mrb[0].mxu0
    %938 = vdwg.mxu0
    %939 = vmatprep.subr.bf16.mxu0 %v675
    %940 = vmatpush1.bf16.msra.mxu0 %v674
    %941 = vmatprep.subr.bf16.mxu0 %v677
    %942 = vmatpush1.bf16.msra.mxu0 %v676
    %943 = vmatprep.subr.bf16.mxu0 %v679
    %944 = vmatpush1.bf16.msra.mxu0 %v678
    %945 = vmatprep.subr.bf16.mxu0 %v681
    %946 = vmatpush1.bf16.msra.mxu0 %v680
    %947 = vmatprep.subr.bf16.mxu0 %v683
    %948 = vmatpush1.bf16.msra.mxu0 %v682
    %949 = vmatprep.subr.bf16.mxu0 %v685
    %950 = vmatpush1.bf16.msra.mxu0 %v684
    %951 = vmatprep.subr.bf16.mxu0 %v687
    %952 = vmatpush1.bf16.msra.mxu0 %v686
    %953 = vmatprep.subr.bf16.mxu0 %v689
    %954 = vmatpush1.bf16.msra.mxu0 %v688
    %955 = vmatprep.subr.bf16.mxu0 %v691
    %956 = vmatpush1.bf16.msra.mxu0 %v690
    %957 = vmatprep.subr.bf16.mxu0 %v693
    %958 = vmatpush1.bf16.msra.mxu0 %v692
    %959 = vmatprep.subr.bf16.mxu0 %v695
    %960 = vmatpush1.bf16.msra.mxu0 %v694
    %961 = vmatprep.subr.bf16.mxu0 %v697
    %962 = vmatpush1.bf16.msra.mxu0 %v696
    %963 = vmatprep.subr.bf16.mxu0 %v699
    %964 = vmatpush1.bf16.msra.mxu0 %v698
    %965 = vmatprep.subr.bf16.mxu0 %v701
    %966 = vmatpush1.bf16.msra.mxu0 %v700
    %967 = vmatprep.subr.bf16.mxu0 %v703
    %968 = vmatpush1.bf16.msra.mxu0 %v702
    %969 = vmatprep.subr.bf16.mxu0 %v705
    %970 = vmatpush1.bf16.msra.mxu0 %v704
    %971 = vmatprep.mubr.bf16.mxu0 %v52
    %972 = vmatmul.mubr.bf16.gmra.mrb[0].mxu0 %v51
    %v973 = vpop.f32.mrb[0].mxu0
    %v974 = vadd.f32 %v933, %v973
    %v975 = vpop.f32.mrb[0].mxu0
    %v976 = vadd.f32 %v935, %v975
    %v977 = vpop.f32.mrb[0].mxu0
    %v978 = vpop.f32.mrb[0].mxu0
    %979 = vdwg.mxu0
    %980 = vmatprep.subr.bf16.mxu0 %v707
    %981 = vmatpush1.bf16.msra.mxu0 %v706
    %982 = vmatprep.subr.bf16.mxu0 %v709
    %983 = vmatpush1.bf16.msra.mxu0 %v708
    %984 = vmatprep.subr.bf16.mxu0 %v711
    %985 = vmatpush1.bf16.msra.mxu0 %v710
    %986 = vmatprep.subr.bf16.mxu0 %v713
    %987 = vmatpush1.bf16.msra.mxu0 %v712
    %988 = vmatprep.subr.bf16.mxu0 %v715
    %989 = vmatpush1.bf16.msra.mxu0 %v714
    %990 = vmatprep.subr.bf16.mxu0 %v717
    %991 = vmatpush1.bf16.msra.mxu0 %v716
    %992 = vmatprep.subr.bf16.mxu0 %v719
    %993 = vmatpush1.bf16.msra.mxu0 %v718
    %994 = vmatprep.subr.bf16.mxu0 %v721
    %995 = vmatpush1.bf16.msra.mxu0 %v720
    %996 = vmatprep.subr.bf16.mxu0 %v723
    %997 = vmatpush1.bf16.msra.mxu0 %v722
    %998 = vmatprep.subr.bf16.mxu0 %v725
    %999 = vmatpush1.bf16.msra.mxu0 %v724
    %1000 = vmatprep.subr.bf16.mxu0 %v727
    %1001 = vmatpush1.bf16.msra.mxu0 %v726
    %1002 = vmatprep.subr.bf16.mxu0 %v729
    %1003 = vmatpush1.bf16.msra.mxu0 %v728
    %1004 = vmatprep.subr.bf16.mxu0 %v731
    %1005 = vmatpush1.bf16.msra.mxu0 %v730
    %1006 = vmatprep.subr.bf16.mxu0 %v733
    %1007 = vmatpush1.bf16.msra.mxu0 %v732
    %1008 = vmatprep.subr.bf16.mxu0 %v735
    %1009 = vmatpush1.bf16.msra.mxu0 %v734
    %1010 = vmatprep.subr.bf16.mxu0 %v737
    %1011 = vmatpush1.bf16.msra.mxu0 %v736
    %1012 = vmatprep.mubr.bf16.mxu0 %v54
    %1013 = vmatmul.mubr.bf16.gmra.mrb[0].mxu0 %v53
    %v1014 = vpop.f32.mrb[0].mxu0
    %v1015 = vadd.f32 %v974, %v1014
    %v1016 = vpop.f32.mrb[0].mxu0
    %v1017 = vadd.f32 %v976, %v1016
    %v1018 = vpop.f32.mrb[0].mxu0
    %v1019 = vpop.f32.mrb[0].mxu0
    %1020 = vdwg.mxu0
    %1021 = vmatprep.subr.bf16.mxu0 %v739
    %1022 = vmatpush1.bf16.msra.mxu0 %v738
    %1023 = vmatprep.subr.bf16.mxu0 %v741
    %1024 = vmatpush1.bf16.msra.mxu0 %v740
    %1025 = vmatprep.subr.bf16.mxu0 %v743
    %1026 = vmatpush1.bf16.msra.mxu0 %v742
    %1027 = vmatprep.subr.bf16.mxu0 %v745
    %1028 = vmatpush1.bf16.msra.mxu0 %v744
    %1029 = vmatprep.subr.bf16.mxu0 %v747
    %1030 = vmatpush1.bf16.msra.mxu0 %v746
    %1031 = vmatprep.subr.bf16.mxu0 %v749
    %1032 = vmatpush1.bf16.msra.mxu0 %v748
    %1033 = vmatprep.subr.bf16.mxu0 %v751
    %1034 = vmatpush1.bf16.msra.mxu0 %v750
    %1035 = vmatprep.subr.bf16.mxu0 %v753
    %1036 = vmatpush1.bf16.msra.mxu0 %v752
    %1037 = vmatprep.subr.bf16.mxu0 %v755
    %1038 = vmatpush1.bf16.msra.mxu0 %v754
    %1039 = vmatprep.subr.bf16.mxu0 %v757
    %1040 = vmatpush1.bf16.msra.mxu0 %v756
    %1041 = vmatprep.subr.bf16.mxu0 %v759
    %1042 = vmatpush1.bf16.msra.mxu0 %v758
    %1043 = vmatprep.subr.bf16.mxu0 %v761
    %1044 = vmatpush1.bf16.msra.mxu0 %v760
    %1045 = vmatprep.subr.bf16.mxu0 %v763
    %1046 = vmatpush1.bf16.msra.mxu0 %v762
    %1047 = vmatprep.subr.bf16.mxu0 %v765
    %1048 = vmatpush1.bf16.msra.mxu0 %v764
    %1049 = vmatprep.subr.bf16.mxu0 %v767
    %1050 = vmatpush1.bf16.msra.mxu0 %v766
    %1051 = vmatprep.subr.bf16.mxu0 %v769
    %1052 = vmatpush1.bf16.msra.mxu0 %v768
    %1053 = vmatprep.mubr.bf16.mxu0 %v56
    %1054 = vmatmul.mubr.bf16.gmra.mrb[0].mxu0 %v55
    %v1055 = vpop.f32.mrb[0].mxu0
    %v1056 = vadd.f32 %v1015, %v1055
    %v1057 = vpop.f32.mrb[0].mxu0
    %v1058 = vadd.f32 %v1017, %v1057
    %v1059 = vpop.f32.mrb[0].mxu0
    %v1060 = vpop.f32.mrb[0].mxu0
    %1061 = vdwg.mxu0
    %v1062 = vmax.f32 %v1056, 0.0
    %v1063 = vmax.f32 %v1058, 0.0
    %v1064 = vld [vmem:[%s5] sm:$0xff]
    %v1065 = vld [vmem:[%s5 + $0x8] sm:$0xff]
    %v1066 = vld [vmem:[%s5 + $0x10] sm:$0xff]
    %v1067 = vld [vmem:[%s5 + $0x18] sm:$0xff]
    %v1068 = vld [vmem:[%s5 + $0x20] sm:$0xff]
    %v1069 = vld [vmem:[%s5 + $0x28] sm:$0xff]
    %v1070 = vld [vmem:[%s5 + $0x30] sm:$0xff]
    %v1071 = vld [vmem:[%s5 + $0x38] sm:$0xff]
    %v1072 = vld [vmem:[%s5 + $0x40] sm:$0xff]
    %v1073 = vld [vmem:[%s5 + $0x48] sm:$0xff]
    %v1074 = vld [vmem:[%s5 + $0x50] sm:$0xff]
    %v1075 = vld [vmem:[%s5 + $0x58] sm:$0xff]
    %v1076 = vld [vmem:[%s5 + $0x60] sm:$0xff]
    %v1077 = vld [vmem:[%s5 + $0x68] sm:$0xff]
    %v1078 = vld [vmem:[%s5 + $0x70] sm:$0xff]
    %v1079 = vld [vmem:[%s5 + $0x78] sm:$0xff]
    %v1080 = vld [vmem:[%s5 + $0x80] sm:$0xff]
    %v1081 = vld [vmem:[%s5 + $0x88] sm:$0xff]
    %v1082 = vld [vmem:[%s5 + $0x90] sm:$0xff]
    %v1083 = vld [vmem:[%s5 + $0x98] sm:$0xff]
    %v1084 = vld [vmem:[%s5 + $0xa0] sm:$0xff]
    %v1085 = vld [vmem:[%s5 + $0xa8] sm:$0xff]
    %v1086 = vld [vmem:[%s5 + $0xb0] sm:$0xff]
    %v1087 = vld [vmem:[%s5 + $0xb8] sm:$0xff]
    %v1088 = vld [vmem:[%s5 + $0xc0] sm:$0xff]
    %v1089 = vld [vmem:[%s5 + $0xc8] sm:$0xff]
    %v1090 = vld [vmem:[%s5 + $0xd0] sm:$0xff]
    %v1091 = vld [vmem:[%s5 + $0xd8] sm:$0xff]
    %v1092 = vld [vmem:[%s5 + $0xe0] sm:$0xff]
    %v1093 = vld [vmem:[%s5 + $0xe8] sm:$0xff]
    %v1094 = vld [vmem:[%s5 + $0xf0] sm:$0xff]
    %v1095 = vld [vmem:[%s5 + $0xf8] sm:$0xff]
    %v1096 = vld [vmem:[%s6] sm:$0x1]
    %v1098 = vlaneseq
    %v1099 = vshrl.u32 %v1098, 7
    %v1100 = vsub.s32 0, %v1099
    %v1101 = vrot.slane %v1096, %v1100
    %1103 = vmatprep.subr.mxu0 0.0
    %1104 = vmatpush1.msra.mxu0 %v1064
    %1105 = vmatprep.subr.mxu0 0.0
    %1106 = vmatpush1.msra.mxu0 %v1065
    %1107 = vmatprep.subr.mxu0 0.0
    %1108 = vmatpush1.msra.mxu0 %v1066
    %1109 = vmatprep.subr.mxu0 0.0
    %1110 = vmatpush1.msra.mxu0 %v1067
    %1111 = vmatprep.subr.mxu0 0.0
    %1112 = vmatpush1.msra.mxu0 %v1068
    %1113 = vmatprep.subr.mxu0 0.0
    %1114 = vmatpush1.msra.mxu0 %v1069
    %1115 = vmatprep.subr.mxu0 0.0
    %1116 = vmatpush1.msra.mxu0 %v1070
    %1117 = vmatprep.subr.mxu0 0.0
    %1118 = vmatpush1.msra.mxu0 %v1071
    %1119 = vmatprep.subr.mxu0 0.0
    %1120 = vmatpush1.msra.mxu0 %v1072
    %1121 = vmatprep.subr.mxu0 0.0
    %1122 = vmatpush1.msra.mxu0 %v1073
    %1123 = vmatprep.subr.mxu0 0.0
    %1124 = vmatpush1.msra.mxu0 %v1074
    %1125 = vmatprep.subr.mxu0 0.0
    %1126 = vmatpush1.msra.mxu0 %v1075
    %1127 = vmatprep.subr.mxu0 0.0
    %1128 = vmatpush1.msra.mxu0 %v1076
    %1129 = vmatprep.subr.mxu0 0.0
    %1130 = vmatpush1.msra.mxu0 %v1077
    %1131 = vmatprep.subr.mxu0 0.0
    %1132 = vmatpush1.msra.mxu0 %v1078
    %1133 = vmatprep.subr.mxu0 0.0
    %1134 = vmatpush1.msra.mxu0 %v1079
    %1135 = vmatprep.subr.mxu0 0.0
    %1136 = vmatpush1.msra.mxu0 %v1080
    %1137 = vmatprep.subr.mxu0 0.0
    %1138 = vmatpush1.msra.mxu0 %v1081
    %1139 = vmatprep.subr.mxu0 0.0
    %1140 = vmatpush1.msra.mxu0 %v1082
    %1141 = vmatprep.subr.mxu0 0.0
    %1142 = vmatpush1.msra.mxu0 %v1083
    %1143 = vmatprep.subr.mxu0 0.0
    %1144 = vmatpush1.msra.mxu0 %v1084
    %1145 = vmatprep.subr.mxu0 0.0
    %1146 = vmatpush1.msra.mxu0 %v1085
    %1147 = vmatprep.subr.mxu0 0.0
    %1148 = vmatpush1.msra.mxu0 %v1086
    %1149 = vmatprep.subr.mxu0 0.0
    %1150 = vmatpush1.msra.mxu0 %v1087
    %1151 = vmatprep.subr.mxu0 0.0
    %1152 = vmatpush1.msra.mxu0 %v1088
    %1153 = vmatprep.subr.mxu0 0.0
    %1154 = vmatpush1.msra.mxu0 %v1089
    %1155 = vmatprep.subr.mxu0 0.0
    %1156 = vmatpush1.msra.mxu0 %v1090
    %1157 = vmatprep.subr.mxu0 0.0
    %1158 = vmatpush1.msra.mxu0 %v1091
    %1159 = vmatprep.subr.mxu0 0.0
    %1160 = vmatpush1.msra.mxu0 %v1092
    %1161 = vmatprep.subr.mxu0 0.0
    %1162 = vmatpush1.msra.mxu0 %v1093
    %1163 = vmatprep.subr.mxu0 0.0
    %1164 = vmatpush1.msra.mxu0 %v1094
    %1165 = vmatprep.subr.mxu0 0.0
    %1166 = vmatpush1.msra.mxu0 %v1095
    %1167 = vmatprep.mubr.f32.mxu0 %v1063
    %1168 = vmatmul.mubr.f32.gmra.mrb[0].mxu0 %v1062
    %v1169 = vpop.f32.mrb[0].mxu0
    %v1170 = vadd.f32 %v1101, %v1169
    %v1171 = vpop.f32.mrb[0].mxu0
    %1172 = vdwg.mxu0
    %vm1173 = vcmask 130048
    %1174 = vst.msk [vmem:[#allocation5] sm:$0xff] %vm1173, %v1170
    // Predicated region
    $region34: #{tpu_custom_call.1} parent=1 // pred_check
      _
    $region35: #{tpu_custom_call.1} parent=1 // pred_check_branch
      %1176 = sbr.rel (0) target = $region37
    $region36: #{tpu_custom_call.1} parent=1 // pred_region
      %s1178 = ssub.s32 128, 128
      %1179 = vsyncadd [#allocation4], %s1178
      %s1181 = sshll.u32 [#allocation5], 4
      %s1182 = int_to_ptr.vmem [resolvable:$true] %s1181
      %1184 = dma.vmem_to_hbm [thread:$0]  %s1182, 128, %s7, [#allocation4]
    $region37: #{tpu_custom_call.1} parent=1 // pred_fallthru
      _
    // Predicated region
    $region38: #{tpu_custom_call.1} parent=1 // pred_check
      _
    $region39: #{tpu_custom_call.1} parent=1 // pred_check_branch
      %1186 = sbr.rel (0) target = $region41
    $region40: #{tpu_custom_call.1} parent=1 // pred_region
      %1187 = dma.done [#allocation4], 128
    $region41: #{tpu_custom_call.1} parent=1 // pred_fallthru
      _
    %1188 = vsyncpa [#allocation3], 1
    %1189 = vsyncpa [#allocation4], 1

</llo_original>
